<compile_context>
chip_gen: v7x
topology: tpu7x:2x2x1
jax: 0.10.0
libtpu: 0.0.40
codegen_flags: <defaults>
</compile_context>

<pallas_src>
import functools

import jax
import jax.numpy as jnp
from jax.experimental import pallas as pl
from jax.experimental.pallas import tpu as pltpu


def _focal_loss_kernel(logits_ref, targets_ref, partial_ref, *,
                       alpha, gamma, n, tile_n):
    """One grid step: focal loss for a (tile_n, C) block, reduced to a scalar
    partial sum broadcast into this block's (1, 8, 128) output tile."""
    i = pl.program_id(0)

    logits = logits_ref[...].astype(jnp.float32)            # (tile_n, C)
    tgt = targets_ref[...]                                   # (tile_n, 1) int32

    # Numerically stable log-sum-exp over the class (lane) axis.
    m = jnp.max(logits, axis=-1, keepdims=True)              # (tile_n, 1)
    lse = m + jnp.log(jnp.sum(jnp.exp(logits - m), axis=-1, keepdims=True))

    # Target-class logit via a one-hot select (TPU needs >=2D iota).
    col = jax.lax.broadcasted_iota(jnp.int32, logits.shape, 1)
    logit_t = jnp.sum(jnp.where(col == tgt, logits, 0.0),
                      axis=-1, keepdims=True)                # (tile_n, 1)

    # cross_entropy(reduction='none'); clamp tiny negative rounding so the
    # focal modulation never sees a negative base.
    ce = jnp.maximum(lse - logit_t, 0.0)                     # (tile_n, 1)
    pt = jnp.exp(-ce)
    one_m_pt = 1.0 - pt
    if gamma == 2.0:
        mod = one_m_pt * one_m_pt            # single VPU mul, no EUP pow
    elif float(gamma).is_integer() and gamma >= 0:
        mod = one_m_pt ** int(gamma)         # multiply chain
    else:
        mod = one_m_pt ** jnp.float32(gamma)
    loss = alpha * mod * ce                                  # (tile_n, 1)

    # Mask rows of a ragged final tile that fall past N.
    row = jax.lax.broadcasted_iota(jnp.int32, loss.shape, 0)
    valid = (i * tile_n + row) < n
    block_sum = jnp.sum(jnp.where(valid, loss, 0.0))

    # Per-block partial sum, broadcast over a tile-aligned (1, 8, 128) block.
    partial_ref[...] = jnp.broadcast_to(block_sum, partial_ref.shape)


def _choose_tile_n(n, c, itemsize):
    """~2 MiB of logits per block: 2 inputs x 2 pipeline buffers stays well
    inside scoped VMEM on every TPU generation (incl. v7x's 64 MiB)."""
    target_bytes = 2 * 1024 * 1024
    tile = target_bytes // max(1, c * itemsize)
    tile = max(8, min(tile, 1024, n))
    tile -= tile % 8
    tile = max(tile, 8)
    if tile >= n:
        return n
    return tile


def focal_loss(inputs, targets, alpha=0.75, gamma=2.0, tile_n=None):
    """Pallas TPU implementation of FocalLoss.forward (mean focal loss)."""
    if targets.ndim > 1:
        targets = targets.squeeze(1)          # mirrors `targets.squeeze(1)`
    n, c = inputs.shape
    targets_2d = targets.astype(jnp.int32).reshape(n, 1)

    if tile_n is None:
        tile_n = _choose_tile_n(n, c, inputs.dtype.itemsize)
    num_blocks = -(-n // tile_n)

    kernel = functools.partial(
        _focal_loss_kernel, alpha=float(alpha), gamma=float(gamma),
        n=n, tile_n=tile_n)

    cost = pl.CostEstimate(
        flops=8 * n * c,
        transcendentals=n * c + 2 * n,
        bytes_accessed=(n * c * inputs.dtype.itemsize
                        + n * 4
                        + num_blocks * 8 * 128 * 4),
    )

    partials = pl.pallas_call(
        kernel,
        out_shape=jax.ShapeDtypeStruct((num_blocks, 8, 128), jnp.float32),
        grid=(num_blocks,),
        in_specs=[
            pl.BlockSpec((tile_n, c), lambda i: (i, 0)),   # logits (native dtype)
            pl.BlockSpec((tile_n, 1), lambda i: (i, 0)),   # targets int32
        ],
        out_specs=pl.BlockSpec((1, 8, 128), lambda i: (i, 0, 0)),
        compiler_params=pltpu.CompilerParams(
            dimension_semantics=("parallel",)),
        cost_estimate=cost,
    )(inputs, targets_2d)

    # Final reduction of per-block partial sums (tiny) in the wrapper.
    return jnp.sum(partials[:, 0, 0]) / jnp.float32(n)


def _focal_loss_ref(inputs, targets, alpha=0.75, gamma=2.0):
    """Pure-JAX reference (matches the torch cross_entropy-based path)."""
    if targets.ndim > 1:
        targets = targets.squeeze(1)
    logits = inputs.astype(jnp.float32)
    lse = jax.scipy.special.logsumexp(logits, axis=-1)
    logit_t = jnp.take_along_axis(
        logits, targets[:, None].astype(jnp.int32), axis=-1)[:, 0]
    ce = lse - logit_t
    pt = jnp.exp(-ce)
    return jnp.mean(alpha * (1.0 - pt) ** gamma * ce)


if __name__ == "__main__":
    key = jax.random.PRNGKey(0)
    k1, k2, k3, k4 = jax.random.split(key, 4)

    # Case 1: small single-block case; targets arrive as (N, 1) to exercise
    # the squeeze branch.
    N1, C1 = 8, 32
    x1 = jax.random.normal(k1, (N1, C1), dtype=jnp.float32)
    t1 = jax.random.randint(k2, (N1, 1), 0, C1, dtype=jnp.int32)
    out1 = focal_loss(x1, t1)
    jax.block_until_ready(out1)
    ref1 = _focal_loss_ref(x1, t1)
    assert jnp.allclose(out1, ref1, rtol=1e-5, atol=1e-6), (out1, ref1)

    # Case 2: multi-block grid with a ragged last tile (forced small tile).
    N2, C2 = 272, 40
    x2 = jax.random.normal(k3, (N2, C2), dtype=jnp.float32)
    t2 = jax.random.randint(k4, (N2,), 0, C2, dtype=jnp.int32)
    out2 = focal_loss(x2, t2, tile_n=128)
    jax.block_until_ready(out2)
    ref2 = _focal_loss_ref(x2, t2)
    assert jnp.allclose(out2, ref2, rtol=1e-5, atol=1e-6), (out2, ref2)

    print("KERNEL_OK")
</pallas_src>

<mosaic_0001>
module attributes {stable_mosaic.version = 11 : i64} {
  func.func @_focal_loss_kernel(%arg0: i32, %arg1: memref<8x32xf32, #tpu.memory_space<vmem>>, %arg2: memref<8x1xi32, #tpu.memory_space<vmem>>, %arg3: memref<1x8x128xf32, #tpu.memory_space<vmem>>) attributes {dimension_semantics = [#tpu.dimension_semantics<parallel>], iteration_bounds = array<i64: 1>, scalar_prefetch = 0 : i64, scratch_operands = 0 : i64, tpu.core_type = #tpu.core_type<tc>, window_params = [{transform_indices = @transform_0, window_bounds = array<i64: 8, 32>}, {transform_indices = @transform_1, window_bounds = array<i64: 8, 1>}, {transform_indices = @transform_2, window_bounds = array<i64: 1, 8, 128>}]} {
    %c0 = arith.constant 0 : index
    %c0_0 = arith.constant 0 : index
    %0 = vector.load %arg1[%c0, %c0_0] : memref<8x32xf32, #tpu.memory_space<vmem>>, vector<8x32xf32>
    %c0_1 = arith.constant 0 : index
    %c0_2 = arith.constant 0 : index
    %1 = vector.load %arg2[%c0_1, %c0_2] : memref<8x1xi32, #tpu.memory_space<vmem>>, vector<8x1xi32>
    %cst = arith.constant dense<0xFF800000> : vector<8xf32>
    %2 = vector.multi_reduction <maximumf>, %0, %cst [1] : vector<8x32xf32> to vector<8xf32>
    %3 = vector.shape_cast %2 : vector<8xf32> to vector<8x1xf32>
    %4 = vector.broadcast %3 : vector<8x1xf32> to vector<8x32xf32>
    %5 = arith.subf %0, %4 : vector<8x32xf32>
    %6 = math.exp %5 : vector<8x32xf32>
    %cst_3 = arith.constant dense<0.000000e+00> : vector<8xf32>
    %7 = vector.multi_reduction <add>, %6, %cst_3 [1] : vector<8x32xf32> to vector<8xf32>
    %8 = vector.shape_cast %7 : vector<8xf32> to vector<8x1xf32>
    %9 = math.log %8 : vector<8x1xf32>
    %10 = arith.addf %3, %9 : vector<8x1xf32>
    %11 = tpu.iota {dimensions = array<i32: 1>} : vector<8x32xi32>
    %12 = vector.broadcast %1 : vector<8x1xi32> to vector<8x32xi32>
    %13 = arith.cmpi eq, %11, %12 : vector<8x32xi32>
    %cst_4 = arith.constant 0.000000e+00 : f32
    %14 = vector.broadcast %cst_4 : f32 to vector<8x32xf32>
    %15 = arith.select %13, %0, %14 : vector<8x32xi1>, vector<8x32xf32>
    %cst_5 = arith.constant dense<0.000000e+00> : vector<8xf32>
    %16 = vector.multi_reduction <add>, %15, %cst_5 [1] : vector<8x32xf32> to vector<8xf32>
    %17 = vector.shape_cast %16 : vector<8xf32> to vector<8x1xf32>
    %18 = arith.subf %10, %17 : vector<8x1xf32>
    %cst_6 = arith.constant 0.000000e+00 : f32
    %19 = vector.broadcast %cst_6 : f32 to vector<8x1xf32>
    %20 = arith.maximumf %18, %19 : vector<8x1xf32>
    %cst_7 = arith.constant 0.000000e+00 : f32
    %21 = vector.broadcast %cst_7 : f32 to vector<8x1xf32>
    %22 = arith.subf %21, %20 : vector<8x1xf32>
    %23 = math.exp %22 : vector<8x1xf32>
    %cst_8 = arith.constant 1.000000e+00 : f32
    %24 = vector.broadcast %cst_8 : f32 to vector<8x1xf32>
    %25 = arith.subf %24, %23 : vector<8x1xf32>
    %26 = arith.mulf %25, %25 : vector<8x1xf32>
    %cst_9 = arith.constant 7.500000e-01 : f32
    %27 = vector.broadcast %cst_9 : f32 to vector<8x1xf32>
    %28 = arith.mulf %27, %26 : vector<8x1xf32>
    %29 = arith.mulf %28, %20 : vector<8x1xf32>
    %30 = tpu.iota {dimensions = array<i32: 0>} : vector<8x1xi32>
    %c8_i32 = arith.constant 8 : i32
    %31 = arith.muli %arg0, %c8_i32 : i32
    %32 = vector.broadcast %31 : i32 to vector<8x1xi32>
    %33 = arith.addi %32, %30 : vector<8x1xi32>
    %c8_i32_10 = arith.constant 8 : i32
    %34 = vector.broadcast %c8_i32_10 : i32 to vector<8x1xi32>
    %35 = arith.cmpi slt, %33, %34 : vector<8x1xi32>
    %cst_11 = arith.constant 0.000000e+00 : f32
    %36 = vector.broadcast %cst_11 : f32 to vector<8x1xf32>
    %37 = arith.select %35, %29, %36 : vector<8x1xi1>, vector<8x1xf32>
    %38 = vector.shape_cast %37 : vector<8x1xf32> to vector<1x8x1xf32>
    %cst_12 = arith.constant dense<0.000000e+00> : vector<1xf32>
    %39 = vector.multi_reduction <add>, %38, %cst_12 [1, 2] : vector<1x8x1xf32> to vector<1xf32>
    %40 = vector.shape_cast %39 : vector<1xf32> to vector<1x1x1xf32>
    %41 = vector.extract %40[0, 0, 0] : f32 from vector<1x1x1xf32>
    %42 = vector.broadcast %41 : f32 to vector<1x8x128xf32>
    %c0_13 = arith.constant 0 : index
    %c0_14 = arith.constant 0 : index
    %c0_15 = arith.constant 0 : index
    %43 = vector.load %arg3[%c0_13, %c0_14, %c0_15] : memref<1x8x128xf32, #tpu.memory_space<vmem>>, vector<1x8x128xf32>
    tpu.vector_store %arg3[%c0_13, %c0_14, %c0_15], %42 {strides = array<i32>} : memref<1x8x128xf32, #tpu.memory_space<vmem>>, vector<1x8x128xf32>,
    return
  }
  func.func @transform_0(%arg0: i32) -> (i32, i32) {
    %c0_i32 = arith.constant 0 : i32
    %c0_i32_0 = arith.constant 0 : i32
    return %arg0, %c0_i32 : i32, i32
  }
  func.func @transform_1(%arg0: i32) -> (i32, i32) {
    %c0_i32 = arith.constant 0 : i32
    %c0_i32_0 = arith.constant 0 : i32
    return %arg0, %c0_i32 : i32, i32
  }
  func.func @transform_2(%arg0: i32) -> (i32, i32, i32) {
    %c0_i32 = arith.constant 0 : i32
    %c0_i32_0 = arith.constant 0 : i32
    %c0_i32_1 = arith.constant 0 : i32
    return %arg0, %c0_i32, %c0_i32_0 : i32, i32, i32
  }
}

</mosaic_0001>

<llo_original>
// kernel: tpu_custom_call.1
$region0: #{tpu_custom_call.1}
  #allocation0 [shape = 'u32[]', space=smem, size = 0x4, offset = 0x4, fixed_abs, tag = 'smem constant byte address 0x4 - core index']
  #allocation1 [shape = 'u32[144,128]{1,0:T(1,128)}', space=vmem, size = 0x12000, scoped, tag = 'internal scratch']
  %s0 = inlined_call_operand.vmem [shape: f32[8,32], index: 0, kind: input, shape index: {}]
  %s1 = inlined_call_operand.vmem [shape: s32[8,1], index: 1, kind: input, shape index: {}]
  %s2 = inlined_call_operand.hbm [shape: f32[1,8,128], index: 2, kind: output, shape index: {}]
  %s3 = sld [smem:[#allocation0]]
  $region18: #{tpu_custom_call.1} parent=0
    _
  %s5 = ssub.s32 1, %s3
  %s6 = scalar_select 0, %s5, %s3
  $region1: #{tpu_custom_call.1} parent=0
    #allocation2 [shape = 'u8[4096]{0}', space=vmem, size = 0x1000, scoped, tag = 'output window, operand 0, single buffered']
    #allocation3 [shape = 's32[1]{0}', space=sflag, size = 0x4, scoped, tag = 'scoped memory for tpu_custom_call.1']
    %7 = vsyncpa [#allocation3], 0
    // Predicated region
    $region2: #{tpu_custom_call.1} parent=1 // pred_check
      _
    $region3: #{tpu_custom_call.1} parent=1 // pred_check_branch
      %9 = sbr.rel (0) target = $region5
    $region4: #{tpu_custom_call.1} parent=1 // pred_region
      _
    $region5: #{tpu_custom_call.1} parent=1 // pred_fallthru
      _
    // Predicated region
    $region6: #{tpu_custom_call.1} parent=1 // pred_check
      _
    $region7: #{tpu_custom_call.1} parent=1 // pred_check_branch
      %11 = sbr.rel (0) target = $region9
    $region8: #{tpu_custom_call.1} parent=1 // pred_region
      _
    $region9: #{tpu_custom_call.1} parent=1 // pred_fallthru
      _
    %v12 = vld [vmem:[%s0] sm:$0xff]
    %v13 = vld [vmem:[%s1] sm:$0xff]
    %vm14 = vcmask 261120
    %v15 = vsel %vm14, %v12, -inf
    %16 = vmax.xlane.f32.xlu0 %v15
    %v17 = vpop.xlane.xlu0 %16
    %v18 = vsub.f32 %v12, %v17
    %v19 = vmul.f32 %v18, 1.442695
    %v20 = vpow.pop %v19
    %v21 = vsel %vm14, %v20, 0.0
    %22 = vadd.xlane.f32.xlu0 %v21
    %v23 = vpop.xlane.xlu0 %22
    %v24 = vlog2.pop %v23
    %v25 = vmul.f32 %v24, 0.6931472
    %v26 = vadd.f32 %v17, %v25
    %v27 = vlaneseq
    %v28 = vand.u32 %v27, 127
    %29 = vset.pattern.permute.xlu0 0
    %30 = vperm.xlu0 %29, %v13
    %v31 = vpop.permute.xlu0 %30
    %vm32 = vcmp.eq.s32.totalorder %v28, %v31
    %v33 = vsel %vm32, %v12, 0.0
    %v34 = vsel %vm14, %v33, 0.0
    %35 = vadd.xlane.f32.xlu0 %v34
    %v36 = vpop.xlane.xlu0 %35
    %v37 = vsub.f32 %v26, %v36
    %v38 = vmax.f32 %v37, 0.0
    %v39 = vsub.f32 0.0, %v38
    %v40 = vmul.f32 %v39, 1.442695
    %v41 = vpow.pop %v40
    %v42 = vsub.f32 1.0, %v41
    %v43 = vmul.f32 %v42, %v42
    %v44 = vmul.f32 %v43, 0.75
    %v45 = vmul.f32 %v44, %v38
    %v46 = vlaneseq
    %v47 = vshrl.u32 %v46, 7
    %s48 = smul.u32 0, 8
    %v49 = vstv %s48
    %v50 = vadd.s32 %v49, %v47
    %vm51 = vcmp.lt.s32.totalorder %v50, 8
    %v52 = vsel %vm51, %v45, 0.0
    %vm53 = vcmask 7168
    %v54 = vsel %vm53, %v52, 0.0
    %55 = vadd.xlane.f32.xlu0 %v54
    %v56 = vpop.xlane.xlu0 %55
    %v57 = vrot.slane %v56, 4
    %v58 = vadd.f32 %v56, %v57
    %v59 = vrot.slane %v58, 2
    %v60 = vadd.f32 %v58, %v59
    %v61 = vrot.slane %v60, 1
    %v62 = vadd.f32 %v60, %v61
    %s63 = vtos %v62
    %v64 = vstv %s63
    %65 = vst [vmem:[#allocation2] sm:$0xff] %v64
    // Predicated region
    $region10: #{tpu_custom_call.1} parent=1 // pred_check
      _
    $region11: #{tpu_custom_call.1} parent=1 // pred_check_branch
      %67 = sbr.rel (0) target = $region13
    $region12: #{tpu_custom_call.1} parent=1 // pred_region
      %s69 = ssub.s32 128, 128
      %70 = vsyncadd [#allocation3], %s69
      %s72 = sshll.u32 [#allocation2], 4
      %s73 = int_to_ptr.vmem [resolvable:$true] %s72
      %75 = dma.vmem_to_hbm [thread:$0]  %s73, 128, %s2, [#allocation3]
    $region13: #{tpu_custom_call.1} parent=1 // pred_fallthru
      _
    // Predicated region
    $region14: #{tpu_custom_call.1} parent=1 // pred_check
      _
    $region15: #{tpu_custom_call.1} parent=1 // pred_check_branch
      %77 = sbr.rel (0) target = $region17
    $region16: #{tpu_custom_call.1} parent=1 // pred_region
      %78 = dma.done [#allocation3], 128
    $region17: #{tpu_custom_call.1} parent=1 // pred_fallthru
      _
    %79 = vsyncpa [#allocation3], 1

</llo_original>
